<compile_context>
chip_gen: v7x
topology: tpu7x:2x2x1
jax: 0.10.0
libtpu: 0.0.40
codegen_flags: <defaults>
</compile_context>

<pallas_src>
import functools
import math

import jax
import jax.numpy as jnp
from jax.experimental import pallas as pl
from jax.experimental.pallas import tpu as pltpu

_LANE = 128
_SUBLANE_ALIGN = 16                      # multiple of 8 (f32) and 16 (bf16 sublane packing)
_NEG_BIG = -1e9                          # pad logit: sigmoid -> 0, bce/focal/dice terms -> 0
_VMEM_LIMIT_BYTES = 40 * 1024 * 1024     # < 48 MiB: safe on v7x (64 MiB phys), fine on v5e/v6e


def _round_up(x, m):
    return ((x + m - 1) // m) * m


# ----------------------------- per-element loss math --------------------------------
# All formulas share a single exp(-|x|) per element from which sigmoid, log1p(e) and both
# log-sigmoids are derived.

def _sigmoid_from_e(x, e, *, approx):
    num = jnp.where(x >= 0, 1.0, e)
    if approx:
        return num * pl.reciprocal(1.0 + e, approx=True)   # EUP vrcp, ~1e-3 rel error
    return num / (1.0 + e)


def _bce_elem(x, y, w, *, weighted):
    e = jnp.exp(-jnp.abs(x))
    log1pe = jnp.log1p(e)
    if weighted:
        # torch: BCEWithLogitsLoss(pos_weight = class_w * labels)  (compute_weights())
        # loss = -( pos_w * y * log σ(x) + (1-y) * log(1-σ(x)) )
        #   -log σ(x)  = max(-x, 0) + log1p(e)
        #   -log σ(-x) = max( x, 0) + log1p(e)
        pos_w = (w * y) * y                      # intentional double multiply (matches torch)
        return pos_w * (jnp.maximum(-x, 0.0) + log1pe) + (1.0 - y) * (jnp.maximum(x, 0.0) + log1pe)
    return jnp.maximum(x, 0.0) - x * y + log1pe  # standard stable BCE-with-logits


def _focal_elem(x, y, w, *, weighted, alpha, gamma, approx_sigmoid):
    e = jnp.exp(-jnp.abs(x))
    log1pe = jnp.log1p(e)
    ce = jnp.maximum(x, 0.0) - x * y + log1pe
    p = _sigmoid_from_e(x, e, approx=approx_sigmoid)
    u = 1.0 - (p * y + (1.0 - p) * (1.0 - y))        # 1 - p_t
    g = float(gamma)
    if g.is_integer() and 0 <= g <= 4:               # VALU multiplies instead of EUP pow
        gi = int(g)
        mod = jnp.ones_like(u) if gi == 0 else u
        for _ in range(gi - 1):
            mod = mod * u
    else:
        mod = jnp.power(u, gamma)
    loss = ce * mod
    if weighted:
        wt = (w * y) * y * alpha + (1.0 - y) * (1.0 - alpha)
    else:
        wt = alpha * y + (1.0 - alpha) * (1.0 - y)
    return wt * loss


# ----------------------------------- kernels -----------------------------------------

def _mean_loss_kernel(*refs, elem_fn, inv_count, weighted):
    """grid = (core, row-tile). acc_ref is an (8, lanew) f32 running accumulator."""
    if weighted:
        w_ref, x_ref, y_ref, out_ref, acc_ref = refs
    else:
        x_ref, y_ref, out_ref, acc_ref = refs
        w_ref = None
    i = pl.program_id(1)

    @pl.when(i == 0)
    def _init():
        acc_ref[...] = jnp.zeros_like(acc_ref)

    x = x_ref[...].astype(jnp.float32)
    y = y_ref[...].astype(jnp.float32)
    w = w_ref[...].astype(jnp.float32) if weighted else None   # (1, lanew), broadcasts
    le = elem_fn(x, y, w)
    r, lw = le.shape
    # pure VALU partial sums into the (8, lanew) accumulator (no per-step XLU reduce)
    acc_ref[...] += jnp.sum(le.reshape(r // 8, 8, lw), axis=0)

    @pl.when(i == pl.num_programs(1) - 1)
    def _finalize():
        row = jnp.sum(acc_ref[...], axis=0, keepdims=True)       # one sublane reduce
        out_ref[...] = (jnp.sum(row, axis=1, keepdims=True) * inv_count).reshape(1, 1, 1)


def _dice_kernel(x_ref, y_ref, inter_out, tot_out, inter_acc, tot_acc, *, approx_sigmoid):
    """Per-lane intersection / total accumulators; lanes are folded to classes in JAX."""
    i = pl.program_id(1)

    @pl.when(i == 0)
    def _init():
        inter_acc[...] = jnp.zeros_like(inter_acc)
        tot_acc[...] = jnp.zeros_like(tot_acc)

    x = x_ref[...].astype(jnp.float32)
    y = y_ref[...].astype(jnp.float32)
    e = jnp.exp(-jnp.abs(x))
    p = _sigmoid_from_e(x, e, approx=approx_sigmoid)
    r, lw = x.shape
    inter_acc[...] += jnp.sum((p * y).reshape(r // 8, 8, lw), axis=0)
    tot_acc[...] += jnp.sum((p * p + y * y).reshape(r // 8, 8, lw), axis=0)

    @pl.when(i == pl.num_programs(1) - 1)
    def _finalize():
        inter_out[...] = jnp.sum(inter_acc[...], axis=0, keepdims=True).reshape(1, 1, lw)
        tot_out[...] = jnp.sum(tot_acc[...], axis=0, keepdims=True).reshape(1, 1, lw)


# ----------------------------------- wrappers ----------------------------------------

def compute_class_weights(samples_per_cls, num_classes, beta=0.9999):
    """Mirror of CustomLoss.compute_weights (the per-class vector part)."""
    samples = jnp.asarray(samples_per_cls, dtype=jnp.float32)
    effective_num = 1.0 - jnp.power(jnp.float32(beta), samples)
    w = (1.0 - beta) / effective_num
    w = w / jnp.sum(w) * num_classes
    return w.astype(jnp.float32)


def _lane_dense_layout(B, C, itemsize, tile_budget_bytes):
    lanew = (C * _LANE) // math.gcd(C, _LANE)      # lcm(C, 128): class == lane % C
    total = B * C
    rows = -(-total // lanew)
    tile_r = max(_SUBLANE_ALIGN,
                 (tile_budget_bytes // (lanew * itemsize)) // _SUBLANE_ALIGN * _SUBLANE_ALIGN)
    tile_r = min(tile_r, _round_up(rows, _SUBLANE_ALIGN))
    tiles = -(-rows // tile_r)
    # Leading "parallel" axis uses the 2nd TensorCore on v7x / megacore chips; on single-TC
    # chips it is just a serial split of the same tiles (negligible overhead).
    num_cores = 2 if tiles >= 2 else 1
    tiles_per_core = -(-tiles // num_cores)
    rows_pad = num_cores * tiles_per_core * tile_r
    return lanew, total, tile_r, num_cores, tiles_per_core, rows_pad


def _flatten_pad(arr, rows_pad, lanew, pad_value):
    flat = jnp.reshape(arr, (-1,))                 # free (metadata-only) reshape
    pad = rows_pad * lanew - flat.shape[0]
    if pad:
        # With allow_input_fusion this pad can fuse into the pallas_call input DMA
        # (no materialized padded copy in HBM).
        flat = jnp.pad(flat, (0, pad), constant_values=pad_value)
    return flat.reshape(rows_pad, lanew)


def custom_loss(logits, labels, loss_fn, *, weighted=False, class_weights=None,
                alpha=0.999, gamma=2.0, tile_budget_bytes=4 * 1024 * 1024,
                approx_sigmoid=False):
    B, C = logits.shape
    if not jnp.issubdtype(labels.dtype, jnp.floating):
        labels = labels.astype(jnp.bfloat16)       # 0/1 stream: half the HBM bytes
    if class_weights is None:
        class_weights = jnp.ones((C,), dtype=jnp.float32)
    class_weights = jnp.reshape(class_weights, (C,)).astype(jnp.float32)

    itemsize = max(jnp.dtype(logits.dtype).itemsize, jnp.dtype(labels.dtype).itemsize)
    lanew, total, tile_r, num_cores, tiles_per_core, rows_pad = _lane_dense_layout(
        B, C, itemsize, tile_budget_bytes)

    x = _flatten_pad(logits, rows_pad, lanew, _NEG_BIG)
    y = _flatten_pad(labels, rows_pad, lanew, 0)

    grid = (num_cores, tiles_per_core)
    row_block = pl.BlockSpec((tile_r, lanew), lambda c, i: (c * tiles_per_core + i, 0))
    dim_sem = ("parallel", "arbitrary")

    if loss_fn == "dice":
        kernel = functools.partial(_dice_kernel, approx_sigmoid=approx_sigmoid)
        inter, tot = pl.pallas_call(
            kernel,
            out_shape=(jax.ShapeDtypeStruct((num_cores, 1, lanew), jnp.float32),
                       jax.ShapeDtypeStruct((num_cores, 1, lanew), jnp.float32)),
            grid_spec=pltpu.PrefetchScalarGridSpec(
                num_scalar_prefetch=0,
                grid=grid,
                in_specs=[row_block, row_block],
                out_specs=[pl.BlockSpec((1, 1, lanew), lambda c, i: (c, 0, 0)),
                           pl.BlockSpec((1, 1, lanew), lambda c, i: (c, 0, 0))],
                scratch_shapes=[pltpu.VMEM((8, lanew), jnp.float32),
                                pltpu.VMEM((8, lanew), jnp.float32)]),
            compiler_params=pltpu.CompilerParams(
                dimension_semantics=dim_sem,
                allow_input_fusion=[True, True],
                vmem_limit_bytes=_VMEM_LIMIT_BYTES),
        )(x, y)
        # Tiny finalize in JAX: fold cores, then lanes -> classes (lane % C == class).
        inter_c = jnp.sum(inter, axis=(0, 1)).reshape(lanew // C, C).sum(axis=0)
        tot_c = jnp.sum(tot, axis=(0, 1)).reshape(lanew // C, C).sum(axis=0)
        smooth = 1.0
        dice = 1.0 - (inter_c + smooth) / (tot_c + smooth)
        return jnp.mean(dice)

    # ---- bce / focal: mean over all B*C elements -> lane-dense flattened layout ----
    if loss_fn == "focal":
        elem_fn = functools.partial(_focal_elem, weighted=weighted, alpha=alpha,
                                    gamma=gamma, approx_sigmoid=approx_sigmoid)
    elif loss_fn == "bce":
        elem_fn = functools.partial(_bce_elem, weighted=weighted)
    else:
        raise ValueError(f"unknown loss_fn {loss_fn!r}")

    kernel = functools.partial(_mean_loss_kernel, elem_fn=elem_fn,
                               inv_count=1.0 / total, weighted=weighted)

    in_specs = [row_block, row_block]
    operands = [x, y]
    if weighted:
        wpat = jnp.tile(class_weights, lanew // C).reshape(1, lanew)   # per-lane class weight
        in_specs = [pl.BlockSpec((1, lanew), lambda c, i: (0, 0))] + in_specs
        operands = [wpat] + operands

    out = pl.pallas_call(
        kernel,
        out_shape=jax.ShapeDtypeStruct((num_cores, 1, 1), jnp.float32),
        grid_spec=pltpu.PrefetchScalarGridSpec(
            num_scalar_prefetch=0,
            grid=grid,
            in_specs=in_specs,
            out_specs=pl.BlockSpec((1, 1, 1), lambda c, i: (c, 0, 0)),
            scratch_shapes=[pltpu.VMEM((8, lanew), jnp.float32)]),
        compiler_params=pltpu.CompilerParams(
            dimension_semantics=dim_sem,
            allow_input_fusion=[True] * len(operands),
            vmem_limit_bytes=_VMEM_LIMIT_BYTES),
    )(*operands)
    return jnp.sum(out)       # sum of per-core partial means


custom_loss_jit = jax.jit(
    custom_loss,
    static_argnames=("loss_fn", "weighted", "alpha", "gamma",
                     "tile_budget_bytes", "approx_sigmoid"))


# --------------------------------- pure-JAX reference --------------------------------

def _ref_loss(logits, labels, loss_fn, weighted, class_weights, alpha=0.999, gamma=2.0):
    x = logits.astype(jnp.float32)
    y = labels.astype(jnp.float32)
    p = jax.nn.sigmoid(x)
    ce = jnp.maximum(x, 0.0) - x * y + jnp.log1p(jnp.exp(-jnp.abs(x)))
    w_full = jnp.broadcast_to(class_weights.reshape(1, -1), x.shape) * y   # compute_weights(labels)

    def log_sig(z):
        return -(jnp.maximum(-z, 0.0) + jnp.log1p(jnp.exp(-jnp.abs(z))))

    if loss_fn == "focal":
        p_t = p * y + (1 - p) * (1 - y)
        loss = ce * (1 - p_t) ** gamma
        if weighted:
            w_t = w_full * y * alpha + (1 - y) * (1 - alpha)
            return jnp.mean(w_t * loss)
        return jnp.mean((alpha * y + (1 - alpha) * (1 - y)) * loss)
    if loss_fn == "bce":
        if weighted:
            return jnp.mean(-(w_full * y * log_sig(x) + (1 - y) * log_sig(-x)))
        return jnp.mean(ce)
    if loss_fn == "dice":
        inter = jnp.sum(p * y, axis=0)
        total = jnp.sum(p * p + y * y, axis=0)
        return jnp.mean(1.0 - (inter + 1.0) / (total + 1.0))
    raise ValueError(loss_fn)


# -------------------------------------- main -----------------------------------------

if __name__ == "__main__":
    key = jax.random.PRNGKey(0)
    B, C = 8, 4
    k_logits, k_labels, k2_logits, k2_labels = jax.random.split(key, 4)

    logits = jax.random.normal(k_logits, (B, C), dtype=jnp.float32)
    label_ids = jax.random.randint(k_labels, (B,), 0, C)
    labels = jax.nn.one_hot(label_ids, C, dtype=jnp.float32)

    samples_per_cls = [40, 30, 20, 10]               # args.train_label_cnt.values()
    class_w = compute_class_weights(samples_per_cls, C, beta=0.9999)

    cases = [
        ("bce", False), ("bce", True),
        ("focal", False), ("focal", True),
        ("dice", False),                             # dice branch ignores `weighted`
    ]
    for loss_fn, weighted in cases:
        got = custom_loss_jit(logits, labels, loss_fn, weighted=weighted, class_weights=class_w)
        got = jax.block_until_ready(got)
        want = _ref_loss(logits, labels, loss_fn, weighted, class_w)
        assert jnp.isfinite(got), (loss_fn, weighted, got)
        assert jnp.allclose(got, want, rtol=1e-4, atol=1e-5), (loss_fn, weighted, got, want)

    # exercise the multi-tile + 2-core-partial accumulator path with a small per-tile budget
    B2 = 3000
    logits2 = jax.random.normal(k2_logits, (B2, C), dtype=jnp.float32)
    labels2 = jax.nn.one_hot(jax.random.randint(k2_labels, (B2,), 0, C), C, dtype=jnp.float32)
    for loss_fn, weighted in cases:
        got = custom_loss_jit(logits2, labels2, loss_fn, weighted=weighted,
                              class_weights=class_w, tile_budget_bytes=16 * 1024)
        got = jax.block_until_ready(got)
        want = _ref_loss(logits2, labels2, loss_fn, weighted, class_w)
        assert jnp.isfinite(got), (loss_fn, weighted, got)
        assert jnp.allclose(got, want, rtol=1e-4, atol=1e-5), (loss_fn, weighted, got, want)

    print("KERNEL_OK")
</pallas_src>

<mosaic_0001>
module attributes {stable_mosaic.version = 11 : i64} {
  func.func @_mean_loss_kernel(%arg0: i32, %arg1: i32, %arg2: memref<16x128xf32, #tpu.memory_space<vmem>>, %arg3: memref<16x128xf32, #tpu.memory_space<vmem>>, %arg4: memref<1x1x1xf32, #tpu.memory_space<vmem>>, %arg5: memref<8x128xf32, #tpu.memory_space<vmem>>) attributes {dimension_semantics = [#tpu.dimension_semantics<parallel>, #tpu.dimension_semantics<arbitrary>], iteration_bounds = array<i64: 1, 1>, scalar_prefetch = 0 : i64, scratch_operands = 1 : i64, tpu.core_type = #tpu.core_type<tc>, window_params = [{transform_indices = @transform_0, window_bounds = array<i64: 16, 128>}, {transform_indices = @transform_1, window_bounds = array<i64: 16, 128>}, {transform_indices = @transform_2, window_bounds = array<i64: 1, 1, 1>}]} {
    %c0_i32 = arith.constant 0 : i32
    %0 = arith.cmpi eq, %arg1, %c0_i32 : i32
    %1 = arith.extui %0 : i1 to i32
    %c0_i32_0 = arith.constant 0 : i32
    %2 = arith.cmpi ne, %1, %c0_i32_0 : i32
    scf.if %2 {
      %cst_12 = arith.constant 0.000000e+00 : f32
      %23 = vector.broadcast %cst_12 : f32 to vector<8x128xf32>
      %c0_13 = arith.constant 0 : index
      %c0_14 = arith.constant 0 : index
      %24 = vector.load %arg5[%c0_13, %c0_14] : memref<8x128xf32, #tpu.memory_space<vmem>>, vector<8x128xf32>
      tpu.vector_store %arg5[%c0_13, %c0_14], %23 {strides = array<i32>} : memref<8x128xf32, #tpu.memory_space<vmem>>, vector<8x128xf32>,
    } else {
    }
    %c0 = arith.constant 0 : index
    %c0_1 = arith.constant 0 : index
    %3 = vector.load %arg2[%c0, %c0_1] : memref<16x128xf32, #tpu.memory_space<vmem>>, vector<16x128xf32>
    %c0_2 = arith.constant 0 : index
    %c0_3 = arith.constant 0 : index
    %4 = vector.load %arg3[%c0_2, %c0_3] : memref<16x128xf32, #tpu.memory_space<vmem>>, vector<16x128xf32>
    %5 = math.absf %3 : vector<16x128xf32>
    %cst = arith.constant 0.000000e+00 : f32
    %6 = vector.broadcast %cst : f32 to vector<16x128xf32>
    %7 = arith.subf %6, %5 : vector<16x128xf32>
    %8 = math.exp %7 : vector<16x128xf32>
    %9 = math.log1p %8 : vector<16x128xf32>
    %cst_4 = arith.constant 0.000000e+00 : f32
    %10 = vector.broadcast %cst_4 : f32 to vector<16x128xf32>
    %11 = arith.maximumf %3, %10 : vector<16x128xf32>
    %12 = arith.mulf %3, %4 : vector<16x128xf32>
    %13 = arith.subf %11, %12 : vector<16x128xf32>
    %14 = arith.addf %13, %9 : vector<16x128xf32>
    %c0_5 = arith.constant 0 : index
    %c0_6 = arith.constant 0 : index
    %15 = vector.load %arg5[%c0_5, %c0_6] : memref<8x128xf32, #tpu.memory_space<vmem>>, vector<8x128xf32>
    %16 = vector.shape_cast %14 : vector<16x128xf32> to vector<2x8x128xf32>
    %cst_7 = arith.constant dense<0.000000e+00> : vector<8x128xf32>
    %17 = vector.multi_reduction <add>, %16, %cst_7 [0] : vector<2x8x128xf32> to vector<8x128xf32>
    %18 = arith.addf %15, %17 : vector<8x128xf32>
    %c0_8 = arith.constant 0 : index
    %c0_9 = arith.constant 0 : index
    %19 = vector.load %arg5[%c0_8, %c0_9] : memref<8x128xf32, #tpu.memory_space<vmem>>, vector<8x128xf32>
    tpu.vector_store %arg5[%c0_8, %c0_9], %18 {strides = array<i32>} : memref<8x128xf32, #tpu.memory_space<vmem>>, vector<8x128xf32>,
    %c0_i32_10 = arith.constant 0 : i32
    %20 = arith.cmpi eq, %arg1, %c0_i32_10 : i32
    %21 = arith.extui %20 : i1 to i32
    %c0_i32_11 = arith.constant 0 : i32
    %22 = arith.cmpi ne, %21, %c0_i32_11 : i32
    scf.if %22 {
      %c0_12 = arith.constant 0 : index
      %c0_13 = arith.constant 0 : index
      %23 = vector.load %arg5[%c0_12, %c0_13] : memref<8x128xf32, #tpu.memory_space<vmem>>, vector<8x128xf32>
      %cst_14 = arith.constant dense<0.000000e+00> : vector<128xf32>
      %24 = vector.multi_reduction <add>, %23, %cst_14 [0] : vector<8x128xf32> to vector<128xf32>
      %25 = vector.shape_cast %24 : vector<128xf32> to vector<1x128xf32>
      %cst_15 = arith.constant dense<0.000000e+00> : vector<1xf32>
      %26 = vector.multi_reduction <add>, %25, %cst_15 [1] : vector<1x128xf32> to vector<1xf32>
      %27 = vector.shape_cast %26 : vector<1xf32> to vector<1x1xf32>
      %cst_16 = arith.constant 3.125000e-02 : f32
      %28 = vector.broadcast %cst_16 : f32 to vector<1x1xf32>
      %29 = arith.mulf %27, %28 : vector<1x1xf32>
      %30 = vector.shape_cast %29 : vector<1x1xf32> to vector<1x1x1xf32>
      %c0_17 = arith.constant 0 : index
      %c0_18 = arith.constant 0 : index
      %c0_19 = arith.constant 0 : index
      %31 = vector.load %arg4[%c0_17, %c0_18, %c0_19] : memref<1x1x1xf32, #tpu.memory_space<vmem>>, vector<1x1x1xf32>
      tpu.vector_store %arg4[%c0_17, %c0_18, %c0_19], %30 {strides = array<i32>} : memref<1x1x1xf32, #tpu.memory_space<vmem>>, vector<1x1x1xf32>,
    } else {
    }
    return
  }
  func.func @transform_0(%arg0: i32, %arg1: i32) -> (i32, i32) {
    %c1_i32 = arith.constant 1 : i32
    %0 = arith.muli %arg0, %c1_i32 : i32
    %1 = arith.addi %0, %arg1 : i32
    %c0_i32 = arith.constant 0 : i32
    %c0_i32_0 = arith.constant 0 : i32
    return %1, %c0_i32 : i32, i32
  }
  func.func @transform_1(%arg0: i32, %arg1: i32) -> (i32, i32) {
    %c1_i32 = arith.constant 1 : i32
    %0 = arith.muli %arg0, %c1_i32 : i32
    %1 = arith.addi %0, %arg1 : i32
    %c0_i32 = arith.constant 0 : i32
    %c0_i32_0 = arith.constant 0 : i32
    return %1, %c0_i32 : i32, i32
  }
  func.func @transform_2(%arg0: i32, %arg1: i32) -> (i32, i32, i32) {
    %c0_i32 = arith.constant 0 : i32
    %c0_i32_0 = arith.constant 0 : i32
    %c0_i32_1 = arith.constant 0 : i32
    return %arg0, %c0_i32, %c0_i32_0 : i32, i32, i32
  }
}

</mosaic_0001>

<llo_original>
// kernel: custom_loss.2
$region0: #{custom_loss.2}
  #allocation0 [shape = 'u32[]', space=smem, size = 0x4, offset = 0x4, fixed_abs, tag = 'smem constant byte address 0x4 - core index']
  #allocation1 [shape = 'u32[144,128]{1,0:T(1,128)}', space=vmem, size = 0x12000, scoped, tag = 'internal scratch']
  #allocation2 [shape = 'f32[8,128]{1,0:T(8,128)}', space=vmem, size = 0x1000, scoped, tag = 'scratch operand']
  #allocation3 [shape = 'u32[2048]{0}', space=vmem, size = 0x2000, scoped, tag = 'scoped memory for custom_loss.2']
  #allocation4 [shape = 'u32[2048]{0}', space=vmem, size = 0x2000, scoped, tag = 'scoped memory for custom_loss.2']
  #allocation5 [shape = 'u32[2048]{0}', space=vmem, size = 0x2000, scoped, tag = 'scoped memory for custom_loss.2']
  #allocation6 [shape = 'u32[2048]{0}', space=vmem, size = 0x2000, scoped, tag = 'scoped memory for custom_loss.2']
  #allocation7 [shape = 'u32[2048]{0}', space=vmem, size = 0x2000, scoped, tag = 'scoped memory for custom_loss.2']
  #allocation8 [shape = 'u32[2048]{0}', space=vmem, size = 0x2000, scoped, tag = 'scoped memory for custom_loss.2']
  #allocation9 [shape = 'u32[2048]{0}', space=vmem, size = 0x2000, scoped, tag = 'scoped memory for custom_loss.2']
  #allocation10 [shape = 'u32[2048]{0}', space=vmem, size = 0x2000, scoped, tag = 'scoped memory for custom_loss.2']
  #allocation11 [shape = 'u32[2048]{0}', space=vmem, size = 0x2000, scoped, tag = 'scoped memory for custom_loss.2']
  #allocation12 [shape = 'u32[2048]{0}', space=vmem, size = 0x2000, scoped, tag = 'scoped memory for custom_loss.2']
  %s0 = inlined_call_operand.vmem [shape: f32[32], index: 0, kind: input, shape index: {}]
  %s1 = inlined_call_operand.<no memory space> [shape: f32[], index: 1, kind: input, shape index: {}]
  %s2 = inlined_call_operand.vmem [shape: f32[32], index: 2, kind: input, shape index: {}]
  %s3 = inlined_call_operand.<no memory space> [shape: f32[], index: 3, kind: input, shape index: {}]
  %s4 = inlined_call_operand.hbm [shape: f32[1,1,1], index: 4, kind: output, shape index: {}]
  %s5 = sld [smem:[#allocation0]]
  $region26: #{custom_loss.2} parent=0
    _
  %s7 = ssub.s32 1, %s5
  %s8 = scalar_select 0, %s7, %s5
  %v9 = vstv %s3
  %v10 = vstv %s1
  $region1: #{custom_loss.2} parent=0
    #allocation13 [shape = 'u8[512]{0}', space=vmem, size = 0x400, scoped, tag = 'output window, operand 0, single buffered']
    #allocation14 [shape = 's32[1]{0}', space=sflag, size = 0x4, scoped, tag = 'scoped memory for custom_loss.2']
    #allocation15 [shape = 'u8[8192]{0}', space=vmem, size = 0x2000, dematerialized = true, scoped, tag = 'FusionAdapter Buffer %fusion.2 = f32[16,128]{1,0:T(8,128)} fusion(%param_2.1, %param_3), kind=kLoop, calls=%fused_computation.2.clone, metadata={op_name="jit(custom_loss)/reshape" stack_frame_id=12}']
    #allocation16 [shape = 'u8[8192]{0}', space=vmem, size = 0x2000, dematerialized = true, scoped, tag = 'FusionAdapter Buffer %fusion.1 = f32[16,128]{1,0:T(8,128)} fusion(%param_0.8, %param_1.7), kind=kLoop, calls=%fused_computation.1.clone, metadata={op_name="jit(custom_loss)/reshape" stack_frame_id=17}']
    %11 = vsyncpa [#allocation14], 0
    // Predicated region
    $region2: #{custom_loss.2} parent=1 // pred_check
      _
    $region3: #{custom_loss.2} parent=1 // pred_check_branch
      %13 = sbr.rel (0) target = $region5
    $region4: #{custom_loss.2} parent=1 // pred_region
      %s14 = sadd.s32 0, 0
      %s15 = smul.u32 2, %s14
      %s16 = ssub.s32 1, %s15
      %p17 = scmp.gt.s32.totalorder %s16, 0
      %s18 = scalar_select %p17, %s16, 0
      %s19 = smul.u32 16, %s18
      %p20 = scmp.lt.s32.totalorder %s15, 0
      %s21 = scalar_select %p20, %s15, 0
      %s22 = scalar_lea.vmem %s2, %s21
      %s23 = sadd.s32 0, 0
      %s24 = smul.u32 2, %s23
      %s25 = ssub.s32 1, %s24
      %p26 = scmp.gt.s32.totalorder %s25, 0
      %s27 = scalar_select %p26, %s25, 0
      %s28 = smul.u32 16, %s27
    $region5: #{custom_loss.2} parent=1 // pred_fallthru
      _
    // Predicated region
    $region6: #{custom_loss.2} parent=1 // pred_check
      _
    $region7: #{custom_loss.2} parent=1 // pred_check_branch
      %30 = sbr.rel (0) target = $region9
    $region8: #{custom_loss.2} parent=1 // pred_region
      %s31 = sadd.s32 0, 0
      %s32 = smul.u32 2, %s31
      %s33 = ssub.s32 1, %s32
      %p34 = scmp.gt.s32.totalorder %s33, 0
      %s35 = scalar_select %p34, %s33, 0
      %s36 = smul.u32 16, %s35
      %p37 = scmp.lt.s32.totalorder %s32, 0
      %s38 = scalar_select %p37, %s32, 0
      %s39 = scalar_lea.vmem %s0, %s38
      %s40 = sadd.s32 0, 0
      %s41 = smul.u32 2, %s40
      %s42 = ssub.s32 1, %s41
      %p43 = scmp.gt.s32.totalorder %s42, 0
      %s44 = scalar_select %p43, %s42, 0
      %s45 = smul.u32 16, %s44
    $region9: #{custom_loss.2} parent=1 // pred_fallthru
      _
    %s46 = sadd.s32 0, 0
    %s47 = smul.u32 2, %s46
    %s48 = ssub.s32 1, %s47
    %p49 = scmp.gt.s32.totalorder %s48, 0
    %s50 = scalar_select %p49, %s48, 0
    %s51 = smul.u32 16, %s50
    %p52 = scmp.lt.s32.totalorder %s47, 0
    %s53 = scalar_select %p52, %s47, 0
    %s54 = scalar_lea.vmem %s2, %s53
    %s55 = sadd.s32 0, 0
    %s56 = smul.u32 2, %s55
    %s57 = ssub.s32 1, %s56
    %p58 = scmp.gt.s32.totalorder %s57, 0
    %s59 = scalar_select %p58, %s57, 0
    %s60 = smul.u32 16, %s59
    %p61 = scmp.lt.s32.totalorder %s56, 0
    %s62 = scalar_select %p61, %s56, 0
    %s63 = scalar_lea.vmem %s0, %s62
    %s64 = sadd.s32 0, 0
    %s65 = smul.u32 2, %s64
    %s66 = ssub.s32 1, %s65
    %p67 = scmp.gt.s32.totalorder %s66, 0
    %s68 = scalar_select %p67, %s66, 0
    %s69 = smul.u32 16, %s68
    %p70 = scmp.lt.s32.totalorder %s65, 0
    %s71 = scalar_select %p70, %s65, 0
    %s72 = scalar_lea.vmem %s2, %s71
    %s73 = sadd.s32 0, 0
    %s74 = smul.u32 2, %s73
    %s75 = ssub.s32 1, %s74
    %p76 = scmp.gt.s32.totalorder %s75, 0
    %s77 = scalar_select %p76, %s75, 0
    %s78 = smul.u32 16, %s77
    %s79 = sadd.s32 0, 0
    %s80 = smul.u32 2, %s79
    %s81 = ssub.s32 1, %s80
    %p82 = scmp.gt.s32.totalorder %s81, 0
    %s83 = scalar_select %p82, %s81, 0
    %s84 = smul.u32 16, %s83
    %p85 = scmp.lt.s32.totalorder %s80, 0
    %s86 = scalar_select %p85, %s80, 0
    %s87 = scalar_lea.vmem %s0, %s86
    %s88 = sadd.s32 0, 0
    %s89 = smul.u32 2, %s88
    %s90 = ssub.s32 1, %s89
    %p91 = scmp.gt.s32.totalorder %s90, 0
    %s92 = scalar_select %p91, %s90, 0
    %s93 = smul.u32 16, %s92
    %s94 = ssub.s32 0, %s74
    %p95 = scmp.lt.s32.totalorder %s94, 0
    %s96 = scalar_select %p95, 0, 255
    %s97 = sand.u32 1, %s96
    %s98 = sand.u32 1, %s97
    %v99 = vld [vmem:[%s72] sm:%s98]
    %s100 = ssub.s32 0, %s74
    %v101 = vstv %s100
    %vm102 = vcmp.lt.s32.totalorder %v101, 0
    %v103 = vsel %vm102, %v9, %v99
    %s104 = smul.addr %s74, 1024
    %v105 = vlaneseq
    %v106 = vstv %s104
    %v107 = vadd.s32 %v105, %v106
    %vm108 = vcmp.lt.s32.totalorder %v107, 32
    %v109 = vsel %vm108, %v103, %v9
    %111 = vst [vmem:[#allocation15] sm:$0xff] %v109
    %s112 = scalar_lea.vmem [#allocation15], 8
    %114 = vst [vmem:[%s112] sm:$0xff] %v9
    %s115 = ssub.s32 0, %s89
    %p116 = scmp.lt.s32.totalorder %s115, 0
    %s117 = scalar_select %p116, 0, 255
    %s118 = sand.u32 1, %s117
    %s119 = sand.u32 1, %s118
    %v120 = vld [vmem:[%s87] sm:%s119]
    %s121 = ssub.s32 0, %s89
    %v122 = vstv %s121
    %vm123 = vcmp.lt.s32.totalorder %v122, 0
    %v124 = vsel %vm123, %v10, %v120
    %s125 = smul.addr %s89, 1024
    %v126 = vlaneseq
    %v127 = vstv %s125
    %v128 = vadd.s32 %v126, %v127
    %vm129 = vcmp.lt.s32.totalorder %v128, 32
    %v130 = vsel %vm129, %v124, %v10
    %132 = vst [vmem:[#allocation16] sm:$0xff] %v130
    %s133 = scalar_lea.vmem [#allocation16], 8
    %135 = vst [vmem:[%s133] sm:$0xff] %v10
    %p136 = scmp.eq.s32.totalorder 0, 0
    // Predicated region
    $region10: #{custom_loss.2} parent=1 // pred_check
      %p137 = pneg %p136
    $region11: #{custom_loss.2} parent=1 // pred_check_branch
      %139 = sbr.rel (%p137) target = $region13
    $region12: #{custom_loss.2} parent=1 // pred_region
      %140 = vst [vmem:[#allocation2] sm:$0xff] 0.0
    $region13: #{custom_loss.2} parent=1 // pred_fallthru
      _
    %v141 = vld [vmem:[#allocation15] sm:$0xff]
    %v142 = vld [vmem:[#allocation15 + $0x8] sm:$0xff]
    %v143 = vld [vmem:[#allocation16] sm:$0xff]
    %v144 = vld [vmem:[#allocation16 + $0x8] sm:$0xff]
    %v145 = vand.u32 2147483647, %v141
    %v146 = vand.u32 2147483647, %v142
    %v147 = vsub.f32 0.0, %v145
    %v148 = vsub.f32 0.0, %v146
    %v149 = vmul.f32 %v147, 1.442695
    %v150 = vpow.pop %v149
    %v151 = vmul.f32 %v148, 1.442695
    %v152 = vpow.pop %v151
    %v153 = vadd.f32 %v150, 1.0
    %v154 = vlog2.pop %v153
    %v155 = vmul.f32 %v154, 0.6931472
    %v156 = vmul.f32 -0.5, %v150
    %v157 = vadd.f32 %v156, 1.0
    %v158 = vmul.f32 %v157, %v150
    %v159 = vand.u32 2147483647, %v150
    %vm160 = vcmp.lt.f32.partialorder %v159, 0.0004427343
    %v161 = vsel %vm160, %v158, %v155
    %v162 = vadd.f32 %v152, 1.0
    %v163 = vlog2.pop %v162
    %v164 = vmul.f32 %v163, 0.6931472
    %v165 = vmul.f32 -0.5, %v152
    %v166 = vadd.f32 %v165, 1.0
    %v167 = vmul.f32 %v166, %v152
    %v168 = vand.u32 2147483647, %v152
    %vm169 = vcmp.lt.f32.partialorder %v168, 0.0004427343
    %v170 = vsel %vm169, %v167, %v164
    %v171 = vmax.f32 %v141, 0.0
    %v172 = vmax.f32 %v142, 0.0
    %v173 = vmul.f32 %v141, %v143
    %v174 = vmul.f32 %v142, %v144
    %v175 = vsub.f32 %v171, %v173
    %v176 = vsub.f32 %v172, %v174
    %v177 = vadd.f32 %v175, %v161
    %v178 = vadd.f32 %v176, %v170
    %v179 = vld [vmem:[#allocation2] sm:$0xff]
    %v180 = vadd.f32 %v177, %v178
    %v181 = vadd.f32 %v179, %v180
    %182 = vst [vmem:[#allocation2] sm:$0xff] %v181
    // Predicated region
    $region14: #{custom_loss.2} parent=1 // pred_check
      %p183 = pneg %p136
    $region15: #{custom_loss.2} parent=1 // pred_check_branch
      %185 = sbr.rel (%p183) target = $region17
    $region16: #{custom_loss.2} parent=1 // pred_region
      %v186 = vld [vmem:[#allocation2] sm:$0xff]
      %v187 = vrot.slane %v186, 4
      %v188 = vadd.f32 %v186, %v187
      %v189 = vrot.slane %v188, 2
      %v190 = vadd.f32 %v188, %v189
      %v191 = vrot.slane %v190, 1
      %v192 = vadd.f32 %v190, %v191
      %193 = vadd.xlane.f32.xlu0 %v192
      %v194 = vpop.xlane.xlu0 %193
      %v195 = vmul.f32 %v194, 0.03125
      %vm196 = vcmask 0
      %197 = vst.msk [vmem:[#allocation13] sm:$0x1] %vm196, %v195
    $region17: #{custom_loss.2} parent=1 // pred_fallthru
      _
    // Predicated region
    $region18: #{custom_loss.2} parent=1 // pred_check
      _
    $region19: #{custom_loss.2} parent=1 // pred_check_branch
      %199 = sbr.rel (0) target = $region21
    $region20: #{custom_loss.2} parent=1 // pred_region
      %s201 = ssub.s32 16, 16
      %202 = vsyncadd [#allocation14], %s201
      %s204 = sshll.u32 [#allocation13], 4
      %s205 = int_to_ptr.vmem [resolvable:$true] %s204
      %207 = dma.vmem_to_hbm [thread:$0]  %s205, 16, %s4, [#allocation14]
    $region21: #{custom_loss.2} parent=1 // pred_fallthru
      _
    // Predicated region
    $region22: #{custom_loss.2} parent=1 // pred_check
      _
    $region23: #{custom_loss.2} parent=1 // pred_check_branch
      %209 = sbr.rel (0) target = $region25
    $region24: #{custom_loss.2} parent=1 // pred_region
      %210 = dma.done [#allocation14], 16
    $region25: #{custom_loss.2} parent=1 // pred_fallthru
      _
    %211 = vsyncpa [#allocation14], 1

</llo_original>
